<compile_context>
chip_gen: v5e
topology: v5e:2x2
jax: 0.10.0
libtpu: 0.0.40
codegen_flags: <defaults>
</compile_context>

<pallas_src>
import jax
import jax.numpy as jnp
from jax.experimental import pallas as pl
from jax.experimental.pallas import tpu as pltpu


def nsp_head_kernel(x_ref, wt_ref, b_ref, o_ref):
    # x: (TB, D), wt: (D, 2), b: (1, 2)  ->  o: (TB, 2)
    logits = jnp.dot(x_ref[...], wt_ref[...], preferred_element_type=jnp.float32)
    logits = logits + b_ref[...].astype(jnp.float32)
    o_ref[...] = logits.astype(o_ref.dtype)


def _choose_batch_tile(B, D, itemsize, *, max_tb=2048, tile_budget_bytes=8 << 20):
    """Largest batch tile s.t. one x tile <= tile_budget (double-buffered fits
    the default scoped VMEM on every generation), multiple of 16, capped."""
    tb = tile_budget_bytes // max(1, D * itemsize)
    tb = min(max_tb, tb)
    tb = max(16, (tb // 16) * 16)
    if B <= tb:
        # Single full-extent block: valid even if B is not a multiple of 8.
        tb = B
    return tb


def nsp_head(pooled_output, weight, bias, *, max_tb=2048):
    """pooled_output: (B, d_model); weight: (2, d_model); bias: (2,) -> (B, 2)."""
    B, D = pooled_output.shape
    x_itemsize = jnp.dtype(pooled_output.dtype).itemsize

    # One-time layout prep outside the kernel (free in XLA, outside the loop).
    w_t = weight.T                 # (D, 2): MXU RHS in natural (K, N) orientation
    bias2d = bias.reshape(1, 2)    # (1, 2) for lane-wise broadcast add

    tb = _choose_batch_tile(B, D, x_itemsize, max_tb=max_tb)
    grid = (pl.cdiv(B, tb),)

    cost = pl.CostEstimate(
        flops=2 * B * D * 2,
        transcendentals=0,
        bytes_accessed=(
            B * D * x_itemsize
            + D * 2 * jnp.dtype(w_t.dtype).itemsize
            + 2 * jnp.dtype(bias2d.dtype).itemsize
            + B * 2 * x_itemsize
        ),
    )

    return pl.pallas_call(
        nsp_head_kernel,
        out_shape=jax.ShapeDtypeStruct((B, 2), pooled_output.dtype),
        grid=grid,
        in_specs=[
            # Streamed activation tile: double-buffered by the pipeline.
            pl.BlockSpec((tb, D), lambda i: (i, 0)),
            # Tiny weight/bias: same block every step -> resident in VMEM.
            pl.BlockSpec((D, 2), lambda i: (0, 0)),
            pl.BlockSpec((1, 2), lambda i: (0, 0)),
        ],
        out_specs=pl.BlockSpec((tb, 2), lambda i: (i, 0)),
        compiler_params=pltpu.CompilerParams(
            dimension_semantics=("parallel",),   # shard batch tiles across TCs (v7x)
            vmem_limit_bytes=32 << 20,           # safe on v5e/v6e/v7x; covers 2x tile
        ),
        cost_estimate=cost,
    )(pooled_output, w_t, bias2d)


if __name__ == "__main__":
    key = jax.random.PRNGKey(0)
    k_x, k_w, k_b, k_x2 = jax.random.split(key, 4)

    # --- Small-shape check (module-consistent shapes: batch=2, d_model=32) ---
    d_model = 32
    batch = 2
    pooled_output = jax.random.normal(k_x, (batch, d_model), dtype=jnp.float32)
    weight = jax.random.normal(k_w, (2, d_model), dtype=jnp.float32) * 0.02
    bias = jax.random.normal(k_b, (2,), dtype=jnp.float32) * 0.02

    out = jax.block_until_ready(nsp_head(pooled_output, weight, bias))
    ref = pooled_output @ weight.T + bias
    assert out.shape == (batch, 2)
    assert jnp.allclose(out, ref, atol=1e-5, rtol=1e-5)

    # --- Tiled-path check: force a small batch tile so the grid has >1 step
    #     (exercises the streaming/double-buffered code path). ---
    d_model2 = 128
    batch2 = 48
    x2 = jax.random.normal(k_x2, (batch2, d_model2), dtype=jnp.float32)
    w2 = jax.random.normal(k_w, (2, d_model2), dtype=jnp.float32) * 0.02
    b2 = jax.random.normal(k_b, (2,), dtype=jnp.float32) * 0.02

    out2 = jax.block_until_ready(nsp_head(x2, w2, b2, max_tb=16))  # grid=(3,)
    ref2 = x2 @ w2.T + b2
    assert out2.shape == (batch2, 2)
    assert jnp.allclose(out2, ref2, atol=1e-5, rtol=1e-5)

    print("KERNEL_OK")
</pallas_src>

<mosaic_0001>
module attributes {stable_mosaic.version = 11 : i64} {
  func.func @nsp_head_kernel(%arg0: i32, %arg1: memref<2x32xf32, #tpu.memory_space<vmem>>, %arg2: memref<32x2xf32, #tpu.memory_space<vmem>>, %arg3: memref<1x2xf32, #tpu.memory_space<vmem>>, %arg4: memref<2x2xf32, #tpu.memory_space<vmem>>) attributes {dimension_semantics = [#tpu.dimension_semantics<parallel>], iteration_bounds = array<i64: 1>, scalar_prefetch = 0 : i64, scratch_operands = 0 : i64, tpu.core_type = #tpu.core_type<tc>, window_params = [{transform_indices = @transform_0, window_bounds = array<i64: 2, 32>}, {pipeline_mode = #tpu.pipeline_mode<synchronous>, transform_indices = @transform_1, window_bounds = array<i64: 32, 2>}, {pipeline_mode = #tpu.pipeline_mode<synchronous>, transform_indices = @transform_2, window_bounds = array<i64: 1, 2>}, {transform_indices = @transform_3, window_bounds = array<i64: 2, 2>}]} {
    %c0 = arith.constant 0 : index
    %c0_0 = arith.constant 0 : index
    %0 = vector.load %arg1[%c0, %c0_0] : memref<2x32xf32, #tpu.memory_space<vmem>>, vector<2x32xf32>
    %c0_1 = arith.constant 0 : index
    %c0_2 = arith.constant 0 : index
    %1 = vector.load %arg2[%c0_1, %c0_2] : memref<32x2xf32, #tpu.memory_space<vmem>>, vector<32x2xf32>
    %cst = arith.constant dense<0.000000e+00> : vector<2x2xf32>
    %2 = tpu.matmul %0, %1, %cst {dimension_numbers = #tpu.dot_dimension_numbers<[1], [0], [0], [1], [0, 0, 1, 1], [], []>} : vector<2x32xf32>, vector<32x2xf32>, vector<2x2xf32> -> vector<2x2xf32>
    %c0_3 = arith.constant 0 : index
    %c0_4 = arith.constant 0 : index
    %3 = vector.load %arg3[%c0_3, %c0_4] : memref<1x2xf32, #tpu.memory_space<vmem>>, vector<1x2xf32>
    %4 = vector.broadcast %3 : vector<1x2xf32> to vector<2x2xf32>
    %5 = arith.addf %2, %4 : vector<2x2xf32>
    %c0_5 = arith.constant 0 : index
    %c0_6 = arith.constant 0 : index
    %6 = vector.load %arg4[%c0_5, %c0_6] : memref<2x2xf32, #tpu.memory_space<vmem>>, vector<2x2xf32>
    tpu.vector_store %arg4[%c0_5, %c0_6], %5 {strides = array<i32>} : memref<2x2xf32, #tpu.memory_space<vmem>>, vector<2x2xf32>,
    return
  }
  func.func @transform_0(%arg0: i32) -> (i32, i32) {
    %c0_i32 = arith.constant 0 : i32
    %c0_i32_0 = arith.constant 0 : i32
    return %arg0, %c0_i32 : i32, i32
  }
  func.func @transform_1(%arg0: i32) -> (i32, i32) {
    %c0_i32 = arith.constant 0 : i32
    %c0_i32_0 = arith.constant 0 : i32
    %c0_i32_1 = arith.constant 0 : i32
    return %c0_i32, %c0_i32_0 : i32, i32
  }
  func.func @transform_2(%arg0: i32) -> (i32, i32) {
    %c0_i32 = arith.constant 0 : i32
    %c0_i32_0 = arith.constant 0 : i32
    %c0_i32_1 = arith.constant 0 : i32
    return %c0_i32, %c0_i32_0 : i32, i32
  }
  func.func @transform_3(%arg0: i32) -> (i32, i32) {
    %c0_i32 = arith.constant 0 : i32
    %c0_i32_0 = arith.constant 0 : i32
    return %arg0, %c0_i32 : i32, i32
  }
}

</mosaic_0001>

<llo_original>
// kernel: tpu_custom_call.1
$region0: #{tpu_custom_call.1}
  #allocation0 [shape = 'u32[]', space=smem, size = 0x4, offset = 0x4, fixed_abs, tag = 'smem constant byte address 0x4 - core index']
  #allocation1 [shape = 'u32[72,128]{1,0:T(1,128)}', space=vmem, size = 0x9000, scoped, tag = 'internal scratch']
  %s0 = inlined_call_operand.vmem [shape: f32[2,32], index: 0, kind: input, shape index: {}]
  %s1 = inlined_call_operand.vmem [shape: f32[32,2], index: 1, kind: input, shape index: {}]
  %s2 = inlined_call_operand.vmem [shape: f32[1,2], index: 2, kind: input, shape index: {}]
  %s3 = inlined_call_operand.hbm [shape: f32[2,2], index: 3, kind: output, shape index: {}]
  %s4 = sld [smem:[#allocation0]]
  $region22: #{tpu_custom_call.1} parent=0
    _
  %s6 = ssub.s32 1, %s4
  %s7 = scalar_select 0, %s6, %s4
  $region1: #{tpu_custom_call.1} parent=0
    #allocation2 [shape = 'u8[1024]{0}', space=vmem, size = 0x400, scoped, tag = 'output window, operand 0, single buffered']
    #allocation3 [shape = 's32[1]{0}', space=sflag, size = 0x4, scoped, tag = 'scoped memory for tpu_custom_call.1']
    %8 = vsyncpa [#allocation3], 0
    // Predicated region
    $region2: #{tpu_custom_call.1} parent=1 // pred_check
      _
    $region3: #{tpu_custom_call.1} parent=1 // pred_check_branch
      %10 = sbr.rel (0) target = $region5
    $region4: #{tpu_custom_call.1} parent=1 // pred_region
      _
    $region5: #{tpu_custom_call.1} parent=1 // pred_fallthru
      _
    // Predicated region
    $region6: #{tpu_custom_call.1} parent=1 // pred_check
      _
    $region7: #{tpu_custom_call.1} parent=1 // pred_check_branch
      %12 = sbr.rel (0) target = $region9
    $region8: #{tpu_custom_call.1} parent=1 // pred_region
      _
    $region9: #{tpu_custom_call.1} parent=1 // pred_fallthru
      _
    // Predicated region
    $region10: #{tpu_custom_call.1} parent=1 // pred_check
      _
    $region11: #{tpu_custom_call.1} parent=1 // pred_check_branch
      %14 = sbr.rel (0) target = $region13
    $region12: #{tpu_custom_call.1} parent=1 // pred_region
      _
    $region13: #{tpu_custom_call.1} parent=1 // pred_fallthru
      _
    %v15 = vld [vmem:[%s0] sm:$0x3]
    %v16 = vld [vmem:[%s1] sm:$0xff]
    %v17 = vld [vmem:[%s1 + $0x8] sm:$0xff]
    %v18 = vld [vmem:[%s1 + $0x10] sm:$0xff]
    %v19 = vld [vmem:[%s1 + $0x18] sm:$0xff]
    %v20 = vld [vmem:[%s2] sm:$0x1]
    %v22 = vperm.slane %v20, 0
    %vm24 = vcmask 261120
    %v26 = vsel %vm24, %v15, 0
    %28 = vmatpush.msra.mxu0 0.0
    %29 = vmatpush.msra.mxu0 0.0
    %30 = vmatpush.msra.mxu0 0.0
    %31 = vmatpush.msra.mxu0 0.0
    %32 = vmatpush.msra.mxu0 0.0
    %33 = vmatpush.msra.mxu0 0.0
    %34 = vmatpush.msra.mxu0 0.0
    %35 = vmatpush.msra.mxu0 0.0
    %36 = vmatpush.msra.mxu0 0.0
    %37 = vmatpush.msra.mxu0 0.0
    %38 = vmatpush.msra.mxu0 0.0
    %39 = vmatpush.msra.mxu0 0.0
    %40 = vmatpush.msra.mxu0 %v19
    %41 = vmatpush.msra.mxu0 %v18
    %42 = vmatpush.msra.mxu0 %v17
    %43 = vmatpush.msra.mxu0 %v16
    %44 = vmatmul.f32.gmra.mxu0 %v26
    %v45 = vpop.f32.mrf.mxu0
    %v46 = vadd.f32 %v22, %v45
    %47 = vdwg.mxu0
    %vm48 = vcmask 9216
    %49 = vst.msk [vmem:[#allocation2] sm:$0x3] %vm48, %v46
    // Predicated region
    $region14: #{tpu_custom_call.1} parent=1 // pred_check
      _
    $region15: #{tpu_custom_call.1} parent=1 // pred_check_branch
      %51 = sbr.rel (0) target = $region17
    $region16: #{tpu_custom_call.1} parent=1 // pred_region
      %53 = vsyncadd [#allocation3], 0
      %s55 = sshll.u32 [#allocation2], 4
      %s56 = int_to_ptr.vmem [resolvable:$true] %s55
      %s57 = sshll.u32 %s3, 4
      %s58 = int_to_ptr.hbm [resolvable:$true] %s57
      %60 = dma.vmem_to_hbm [thread:$0]  %s56, 32, %s58, [#allocation3]
    $region17: #{tpu_custom_call.1} parent=1 // pred_fallthru
      _
    // Predicated region
    $region18: #{tpu_custom_call.1} parent=1 // pred_check
      _
    $region19: #{tpu_custom_call.1} parent=1 // pred_check_branch
      %62 = sbr.rel (0) target = $region21
    $region20: #{tpu_custom_call.1} parent=1 // pred_region
      %64 = dma.done [#allocation3], 32
    $region21: #{tpu_custom_call.1} parent=1 // pred_fallthru
      _
    %65 = vsyncpa [#allocation3], 1

</llo_original>
